<compile_context>
chip_gen: v7x
topology: tpu7x:2x2x1
jax: 0.10.0
libtpu: 0.0.40
codegen_flags: <defaults>
</compile_context>

<pallas_src>
import math

import jax
import jax.numpy as jnp
from jax import lax
from jax.experimental import pallas as pl
from jax.experimental.pallas import tpu as pltpu

_EPS = 1e-5
_LANE = 128      # last-dim tiling (lanes)
_SUBLANE = 8     # second-to-last-dim tiling (sublanes, f32)


def _round_up(x, m):
    return (x + m - 1) // m * m


def _gelu_exact(x):
    # PyTorch nn.GELU default: 0.5 * x * (1 + erf(x / sqrt(2)))
    return 0.5 * x * (1.0 + lax.erf(x * (1.0 / math.sqrt(2.0))))


def _bn_train_onepass(x, gamma, beta, n_real):
    # Training-mode BatchNorm1d with biased variance, computed in one data pass:
    # mean = E[x], var = E[x^2] - mean^2.  n_real is a static Python int.
    inv_n = 1.0 / float(n_real)
    s = jnp.sum(x, axis=0, keepdims=True)
    s2 = jnp.sum(x * x, axis=0, keepdims=True)
    mean = s * inv_n
    var = jnp.maximum(s2 * inv_n - mean * mean, 0.0)
    return gamma * (x - mean) * lax.rsqrt(var + _EPS) + beta


def _make_kernel(n_real, n_padded):
    need_row_mask = n_padded != n_real

    def kernel(
        x_ref,               # (Np, Fp) f32, zero-padded
        g1_ref, b1_ref,      # (1, Fp)  f32
        w1_ref, c1_ref,      # (Fp, Hp) bf16, (1, Hp) f32
        g2_ref, b2_ref,      # (1, Hp)  f32
        w2_ref, c2_ref,      # (Hp, Fp) bf16, (1, Fp) f32
        o_ref,               # (Np, Fp)
    ):
        x = x_ref[...].astype(jnp.float32)

        # bn1 + GELU.  Padded rows/cols of x are zero, so unmasked sums over the
        # padded tile equal the sums over the real batch.
        h = _bn_train_onepass(x, g1_ref[...], b1_ref[...], n_real)
        h = _gelu_exact(h)

        # fc1 — bf16 into the MXU, f32 accumulation.
        h = jnp.dot(h.astype(jnp.bfloat16), w1_ref[...],
                    preferred_element_type=jnp.float32) + c1_ref[...]

        # Zero padded batch rows so bn2 statistics only see real rows.
        if need_row_mask:
            rows = lax.broadcasted_iota(jnp.int32, (n_padded, 1), 0)
            h = jnp.where(rows < n_real, h, 0.0)

        # bn2 + GELU
        h = _bn_train_onepass(h, g2_ref[...], b2_ref[...], n_real)
        h = _gelu_exact(h)

        # fc2 + residual (re-read x from VMEM to keep vreg pressure low).
        h = jnp.dot(h.astype(jnp.bfloat16), w2_ref[...],
                    preferred_element_type=jnp.float32) + c2_ref[...]
        o_ref[...] = (h + x_ref[...].astype(jnp.float32)).astype(o_ref.dtype)

    return kernel


def residual_block(x, params):
    """x: (N, F) float array.  params: logical (unpadded) parameter dict."""
    n, f = x.shape
    h_dim = params["w1"].shape[1]

    n_pad = _round_up(max(n, 1), _SUBLANE)
    f_pad = _round_up(f, _LANE)
    h_pad = _round_up(h_dim, _LANE)

    f32 = jnp.float32

    # --- lane-dense, zero-padded operands (padding is mathematically inert) ---
    x_p = jnp.zeros((n_pad, f_pad), f32).at[:n, :f].set(x.astype(f32))

    def pad_vec(v, size, fill=0.0):
        out = jnp.full((1, size), fill, f32)
        return out.at[:, : v.shape[-1]].set(v.reshape(1, -1).astype(f32))

    def pad_mat_bf16(w, rows, cols):
        out = jnp.zeros((rows, cols), f32).at[: w.shape[0], : w.shape[1]].set(
            w.astype(f32))
        return out.astype(jnp.bfloat16)

    operands = (
        x_p,
        pad_vec(params["g1"], f_pad, 1.0), pad_vec(params["b1"], f_pad),
        pad_mat_bf16(params["w1"], f_pad, h_pad), pad_vec(params["c1"], h_pad),
        pad_vec(params["g2"], h_pad, 1.0), pad_vec(params["b2"], h_pad),
        pad_mat_bf16(params["w2"], h_pad, f_pad), pad_vec(params["c2"], f_pad),
    )

    out_bytes = n_pad * f_pad * jnp.dtype(x.dtype).itemsize
    total_bytes = out_bytes + sum(int(a.size) * a.dtype.itemsize for a in operands)
    vmem_limit = int(min(64 * 2**20, max(16 * 2**20, 4 * total_bytes)))

    vmem = pl.BlockSpec(memory_space=pltpu.VMEM)
    out = pl.pallas_call(
        _make_kernel(n, n_pad),
        out_shape=jax.ShapeDtypeStruct((n_pad, f_pad), x.dtype),
        in_specs=[vmem] * len(operands),
        out_specs=vmem,
        compiler_params=pltpu.CompilerParams(vmem_limit_bytes=vmem_limit),
    )(*operands)
    return out[:n, :f]


def init_params(key, in_features, hidden_features=None, dtype=jnp.float32):
    hidden_features = hidden_features or in_features
    assert hidden_features == in_features, (
        "reference forward() is only shape-consistent when hidden == in_features")
    k1, k2, k3, k4 = jax.random.split(key, 4)

    # PyTorch Linear init: U(-1/sqrt(fan_in), 1/sqrt(fan_in)) for weight and bias
    bound1 = 1.0 / math.sqrt(in_features)
    w1 = jax.random.uniform(k1, (hidden_features, in_features), dtype, -bound1, bound1)
    c1 = jax.random.uniform(k2, (hidden_features,), dtype, -bound1, bound1)
    bound2 = 1.0 / math.sqrt(hidden_features)
    w2 = jax.random.uniform(k3, (in_features, hidden_features), dtype, -bound2, bound2)
    c2 = jax.random.uniform(k4, (in_features,), dtype, -bound2, bound2)

    return {
        # bn1 (affine init: gamma=1, beta=0)
        "g1": jnp.ones((in_features,), dtype),
        "b1": jnp.zeros((in_features,), dtype),
        # fc1 stored transposed for row-major matmul: (F, H)
        "w1": w1.T,
        "c1": c1,
        # bn2
        "g2": jnp.ones((hidden_features,), dtype),
        "b2": jnp.zeros((hidden_features,), dtype),
        # fc2 transposed: (H, F)
        "w2": w2.T,
        "c2": c2,
    }


def residual_block_ref(x, params):
    """Pure-JAX f32 reference (exact module semantics) for validation."""
    def bn(v, g, b):
        mean = jnp.mean(v, axis=0, keepdims=True)
        var = jnp.mean((v - mean) ** 2, axis=0, keepdims=True)
        return g * (v - mean) * lax.rsqrt(var + _EPS) + b

    h = _gelu_exact(bn(x, params["g1"], params["b1"]))
    h = h @ params["w1"] + params["c1"]
    h = _gelu_exact(bn(h, params["g2"], params["b2"]))
    h = h @ params["w2"] + params["c2"]
    return h + x


if __name__ == "__main__":
    key = jax.random.PRNGKey(0)
    kx, kp = jax.random.split(key)

    # batch=6 (exercises the padded-row mask), in_features=32, hidden=in.
    N, F = 6, 32
    x = jax.random.normal(kx, (N, F), jnp.float32)
    params = init_params(kp, F)

    out = jax.block_until_ready(residual_block(x, params))
    ref = residual_block_ref(x, params)

    assert out.shape == (N, F)
    # bf16 MXU operands (f32 accumulation) => loosened tolerance vs. f32 reference.
    max_err = float(jnp.max(jnp.abs(out - ref)))
    assert jnp.allclose(out, ref, atol=3e-2, rtol=3e-2), (
        f"mismatch vs reference, max|err|={max_err}")

    print("KERNEL_OK")
</pallas_src>

<mosaic_0001>
module attributes {stable_mosaic.version = 11 : i64} {
  func.func @kernel(%arg0: memref<8x128xf32, #tpu.memory_space<vmem>>, %arg1: memref<1x128xf32, #tpu.memory_space<vmem>>, %arg2: memref<1x128xf32, #tpu.memory_space<vmem>>, %arg3: memref<128x128xbf16, #tpu.memory_space<vmem>>, %arg4: memref<1x128xf32, #tpu.memory_space<vmem>>, %arg5: memref<1x128xf32, #tpu.memory_space<vmem>>, %arg6: memref<1x128xf32, #tpu.memory_space<vmem>>, %arg7: memref<128x128xbf16, #tpu.memory_space<vmem>>, %arg8: memref<1x128xf32, #tpu.memory_space<vmem>>, %arg9: memref<8x128xf32, #tpu.memory_space<vmem>>) attributes {dimension_semantics = [], scalar_prefetch = 0 : i64, scratch_operands = 0 : i64, tpu.core_type = #tpu.core_type<tc>} {
    %c0 = arith.constant 0 : index
    %c0_0 = arith.constant 0 : index
    %0 = vector.load %arg0[%c0, %c0_0] : memref<8x128xf32, #tpu.memory_space<vmem>>, vector<8x128xf32>
    %c0_1 = arith.constant 0 : index
    %c0_2 = arith.constant 0 : index
    %1 = vector.load %arg1[%c0_1, %c0_2] : memref<1x128xf32, #tpu.memory_space<vmem>>, vector<1x128xf32>
    %c0_3 = arith.constant 0 : index
    %c0_4 = arith.constant 0 : index
    %2 = vector.load %arg2[%c0_3, %c0_4] : memref<1x128xf32, #tpu.memory_space<vmem>>, vector<1x128xf32>
    %cst = arith.constant dense<0.000000e+00> : vector<128xf32>
    %3 = vector.multi_reduction <add>, %0, %cst [0] : vector<8x128xf32> to vector<128xf32>
    %4 = vector.shape_cast %3 : vector<128xf32> to vector<1x128xf32>
    %5 = arith.mulf %0, %0 : vector<8x128xf32>
    %cst_5 = arith.constant dense<0.000000e+00> : vector<128xf32>
    %6 = vector.multi_reduction <add>, %5, %cst_5 [0] : vector<8x128xf32> to vector<128xf32>
    %7 = vector.shape_cast %6 : vector<128xf32> to vector<1x128xf32>
    %cst_6 = arith.constant 0.166666672 : f32
    %8 = vector.broadcast %cst_6 : f32 to vector<1x128xf32>
    %9 = arith.mulf %4, %8 : vector<1x128xf32>
    %cst_7 = arith.constant 0.166666672 : f32
    %10 = vector.broadcast %cst_7 : f32 to vector<1x128xf32>
    %11 = arith.mulf %7, %10 : vector<1x128xf32>
    %12 = arith.mulf %9, %9 : vector<1x128xf32>
    %13 = arith.subf %11, %12 : vector<1x128xf32>
    %cst_8 = arith.constant 0.000000e+00 : f32
    %14 = vector.broadcast %cst_8 : f32 to vector<1x128xf32>
    %15 = arith.maximumf %13, %14 : vector<1x128xf32>
    %16 = vector.broadcast %9 : vector<1x128xf32> to vector<8x128xf32>
    %17 = arith.subf %0, %16 : vector<8x128xf32>
    %18 = vector.broadcast %1 : vector<1x128xf32> to vector<8x128xf32>
    %19 = arith.mulf %18, %17 : vector<8x128xf32>
    %cst_9 = arith.constant 9.99999974E-6 : f32
    %20 = vector.broadcast %cst_9 : f32 to vector<1x128xf32>
    %21 = arith.addf %15, %20 : vector<1x128xf32>
    %22 = math.rsqrt %21 : vector<1x128xf32>
    %23 = vector.broadcast %22 : vector<1x128xf32> to vector<8x128xf32>
    %24 = arith.mulf %19, %23 : vector<8x128xf32>
    %25 = vector.broadcast %2 : vector<1x128xf32> to vector<8x128xf32>
    %26 = arith.addf %24, %25 : vector<8x128xf32>
    %cst_10 = arith.constant 5.000000e-01 : f32
    %27 = vector.broadcast %cst_10 : f32 to vector<8x128xf32>
    %28 = arith.mulf %27, %26 : vector<8x128xf32>
    %cst_11 = arith.constant 0.707106769 : f32
    %29 = vector.broadcast %cst_11 : f32 to vector<8x128xf32>
    %30 = arith.mulf %26, %29 : vector<8x128xf32>
    %31 = math.erf %30 : vector<8x128xf32>
    %cst_12 = arith.constant 1.000000e+00 : f32
    %32 = vector.broadcast %cst_12 : f32 to vector<8x128xf32>
    %33 = arith.addf %32, %31 : vector<8x128xf32>
    %34 = arith.mulf %28, %33 : vector<8x128xf32>
    %35 = arith.truncf %34 : vector<8x128xf32> to vector<8x128xbf16>
    %c0_13 = arith.constant 0 : index
    %c0_14 = arith.constant 0 : index
    %36 = vector.load %arg3[%c0_13, %c0_14] : memref<128x128xbf16, #tpu.memory_space<vmem>>, vector<128x128xbf16>
    %cst_15 = arith.constant dense<0.000000e+00> : vector<8x128xf32>
    %37 = tpu.matmul %35, %36, %cst_15 {dimension_numbers = #tpu.dot_dimension_numbers<[1], [0], [0], [1], [0, 0, 1, 1], [], []>} : vector<8x128xbf16>, vector<128x128xbf16>, vector<8x128xf32> -> vector<8x128xf32>
    %c0_16 = arith.constant 0 : index
    %c0_17 = arith.constant 0 : index
    %38 = vector.load %arg4[%c0_16, %c0_17] : memref<1x128xf32, #tpu.memory_space<vmem>>, vector<1x128xf32>
    %39 = vector.broadcast %38 : vector<1x128xf32> to vector<8x128xf32>
    %40 = arith.addf %37, %39 : vector<8x128xf32>
    %41 = tpu.iota {dimensions = array<i32: 0>} : vector<8x1xi32>
    %c6_i32 = arith.constant 6 : i32
    %42 = vector.broadcast %c6_i32 : i32 to vector<8x1xi32>
    %43 = arith.cmpi slt, %41, %42 : vector<8x1xi32>
    %cst_18 = arith.constant 0.000000e+00 : f32
    %44 = vector.shape_cast %43 : vector<8x1xi1> to vector<8x1xi1>
    %45 = vector.broadcast %44 : vector<8x1xi1> to vector<8x128xi1>
    %46 = vector.broadcast %cst_18 : f32 to vector<8x128xf32>
    %47 = arith.select %45, %40, %46 : vector<8x128xi1>, vector<8x128xf32>
    %c0_19 = arith.constant 0 : index
    %c0_20 = arith.constant 0 : index
    %48 = vector.load %arg5[%c0_19, %c0_20] : memref<1x128xf32, #tpu.memory_space<vmem>>, vector<1x128xf32>
    %c0_21 = arith.constant 0 : index
    %c0_22 = arith.constant 0 : index
    %49 = vector.load %arg6[%c0_21, %c0_22] : memref<1x128xf32, #tpu.memory_space<vmem>>, vector<1x128xf32>
    %cst_23 = arith.constant dense<0.000000e+00> : vector<128xf32>
    %50 = vector.multi_reduction <add>, %47, %cst_23 [0] : vector<8x128xf32> to vector<128xf32>
    %51 = vector.shape_cast %50 : vector<128xf32> to vector<1x128xf32>
    %52 = arith.mulf %47, %47 : vector<8x128xf32>
    %cst_24 = arith.constant dense<0.000000e+00> : vector<128xf32>
    %53 = vector.multi_reduction <add>, %52, %cst_24 [0] : vector<8x128xf32> to vector<128xf32>
    %54 = vector.shape_cast %53 : vector<128xf32> to vector<1x128xf32>
    %cst_25 = arith.constant 0.166666672 : f32
    %55 = vector.broadcast %cst_25 : f32 to vector<1x128xf32>
    %56 = arith.mulf %51, %55 : vector<1x128xf32>
    %cst_26 = arith.constant 0.166666672 : f32
    %57 = vector.broadcast %cst_26 : f32 to vector<1x128xf32>
    %58 = arith.mulf %54, %57 : vector<1x128xf32>
    %59 = arith.mulf %56, %56 : vector<1x128xf32>
    %60 = arith.subf %58, %59 : vector<1x128xf32>
    %cst_27 = arith.constant 0.000000e+00 : f32
    %61 = vector.broadcast %cst_27 : f32 to vector<1x128xf32>
    %62 = arith.maximumf %60, %61 : vector<1x128xf32>
    %63 = vector.broadcast %56 : vector<1x128xf32> to vector<8x128xf32>
    %64 = arith.subf %47, %63 : vector<8x128xf32>
    %65 = vector.broadcast %48 : vector<1x128xf32> to vector<8x128xf32>
    %66 = arith.mulf %65, %64 : vector<8x128xf32>
    %cst_28 = arith.constant 9.99999974E-6 : f32
    %67 = vector.broadcast %cst_28 : f32 to vector<1x128xf32>
    %68 = arith.addf %62, %67 : vector<1x128xf32>
    %69 = math.rsqrt %68 : vector<1x128xf32>
    %70 = vector.broadcast %69 : vector<1x128xf32> to vector<8x128xf32>
    %71 = arith.mulf %66, %70 : vector<8x128xf32>
    %72 = vector.broadcast %49 : vector<1x128xf32> to vector<8x128xf32>
    %73 = arith.addf %71, %72 : vector<8x128xf32>
    %cst_29 = arith.constant 5.000000e-01 : f32
    %74 = vector.broadcast %cst_29 : f32 to vector<8x128xf32>
    %75 = arith.mulf %74, %73 : vector<8x128xf32>
    %cst_30 = arith.constant 0.707106769 : f32
    %76 = vector.broadcast %cst_30 : f32 to vector<8x128xf32>
    %77 = arith.mulf %73, %76 : vector<8x128xf32>
    %78 = math.erf %77 : vector<8x128xf32>
    %cst_31 = arith.constant 1.000000e+00 : f32
    %79 = vector.broadcast %cst_31 : f32 to vector<8x128xf32>
    %80 = arith.addf %79, %78 : vector<8x128xf32>
    %81 = arith.mulf %75, %80 : vector<8x128xf32>
    %82 = arith.truncf %81 : vector<8x128xf32> to vector<8x128xbf16>
    %c0_32 = arith.constant 0 : index
    %c0_33 = arith.constant 0 : index
    %83 = vector.load %arg7[%c0_32, %c0_33] : memref<128x128xbf16, #tpu.memory_space<vmem>>, vector<128x128xbf16>
    %cst_34 = arith.constant dense<0.000000e+00> : vector<8x128xf32>
    %84 = tpu.matmul %82, %83, %cst_34 {dimension_numbers = #tpu.dot_dimension_numbers<[1], [0], [0], [1], [0, 0, 1, 1], [], []>} : vector<8x128xbf16>, vector<128x128xbf16>, vector<8x128xf32> -> vector<8x128xf32>
    %c0_35 = arith.constant 0 : index
    %c0_36 = arith.constant 0 : index
    %85 = vector.load %arg8[%c0_35, %c0_36] : memref<1x128xf32, #tpu.memory_space<vmem>>, vector<1x128xf32>
    %86 = vector.broadcast %85 : vector<1x128xf32> to vector<8x128xf32>
    %87 = arith.addf %84, %86 : vector<8x128xf32>
    %c0_37 = arith.constant 0 : index
    %c0_38 = arith.constant 0 : index
    %88 = vector.load %arg0[%c0_37, %c0_38] : memref<8x128xf32, #tpu.memory_space<vmem>>, vector<8x128xf32>
    %89 = arith.addf %87, %88 : vector<8x128xf32>
    %c0_39 = arith.constant 0 : index
    %c0_40 = arith.constant 0 : index
    %90 = vector.load %arg9[%c0_39, %c0_40] : memref<8x128xf32, #tpu.memory_space<vmem>>, vector<8x128xf32>
    tpu.vector_store %arg9[%c0_39, %c0_40], %89 {strides = array<i32>} : memref<8x128xf32, #tpu.memory_space<vmem>>, vector<8x128xf32>,
    return
  }
}

</mosaic_0001>

<llo_original>
// kernel: tpu_custom_call.1
$region0: #{tpu_custom_call.1}
  #allocation0 [shape = 'u32[]', space=smem, size = 0x4, offset = 0x4, fixed_abs, tag = 'smem constant byte address 0x4 - core index']
  #allocation1 [shape = 'u32[144,128]{1,0:T(1,128)}', space=vmem, size = 0x12000, scoped, tag = 'internal scratch']
  %s0 = inlined_call_operand.hbm [shape: f32[8,128], index: 0, kind: input, shape index: {}]
  %s1 = inlined_call_operand.vmem [shape: f32[1,128], index: 1, kind: input, shape index: {}]
  %s2 = inlined_call_operand.vmem [shape: f32[1,128], index: 2, kind: input, shape index: {}]
  %s3 = inlined_call_operand.hbm [shape: bf16[128,128], index: 3, kind: input, shape index: {}]
  %s4 = inlined_call_operand.vmem [shape: f32[1,128], index: 4, kind: input, shape index: {}]
  %s5 = inlined_call_operand.vmem [shape: f32[1,128], index: 5, kind: input, shape index: {}]
  %s6 = inlined_call_operand.vmem [shape: f32[1,128], index: 6, kind: input, shape index: {}]
  %s7 = inlined_call_operand.hbm [shape: bf16[128,128], index: 7, kind: input, shape index: {}]
  %s8 = inlined_call_operand.vmem [shape: f32[1,128], index: 8, kind: input, shape index: {}]
  %s9 = inlined_call_operand.hbm [shape: f32[8,128], index: 9, kind: output, shape index: {}]
  %s10 = sld [smem:[#allocation0]]
  $region58: #{tpu_custom_call.1} parent=0
    _
  %s12 = ssub.s32 1, %s10
  %s13 = scalar_select 0, %s12, %s10
  $region1: #{tpu_custom_call.1} parent=0
    #allocation2 [shape = 'u8[4096]{0}', space=vmem, size = 0x1000, scoped, tag = 'input window, operand 0, single buffered']
    #allocation3 [shape = 's32[1]{0}', space=sflag, size = 0x4, scoped, tag = 'scoped memory for tpu_custom_call.1']
    #allocation4 [shape = 's32[1]{0}', space=sflag, size = 0x4, scoped, tag = 'scoped memory for tpu_custom_call.1']
    #allocation5 [shape = 'u8[32768]{0}', space=vmem, size = 0x8000, scoped, tag = 'input window, operand 3, single buffered']
    #allocation6 [shape = 's32[1]{0}', space=sflag, size = 0x4, scoped, tag = 'scoped memory for tpu_custom_call.1']
    #allocation7 [shape = 'u8[32768]{0}', space=vmem, size = 0x8000, scoped, tag = 'input window, operand 7, single buffered']
    #allocation8 [shape = 'u8[4096]{0}', space=vmem, size = 0x1000, scoped, tag = 'output window, operand 0, single buffered']
    %14 = vsyncpa [#allocation3], 0
    %15 = vsyncpa [#allocation6], 0
    %16 = vsyncpa [#allocation4], 0
    // Predicated region
    $region2: #{tpu_custom_call.1} parent=1 // pred_check
      _
    $region3: #{tpu_custom_call.1} parent=1 // pred_check_branch
      %18 = sbr.rel (0) target = $region5
    $region4: #{tpu_custom_call.1} parent=1 // pred_region
      %s20 = ssub.s32 128, 128
      %21 = vsyncadd [#allocation3], %s20
      %s23 = sshll.u32 [#allocation2], 4
      %s24 = int_to_ptr.vmem [resolvable:$true] %s23
      %26 = dma.hbm_to_vmem [thread:$0]  %s0, 128, %s24, [#allocation3]
    $region5: #{tpu_custom_call.1} parent=1 // pred_fallthru
      _
    // Predicated region
    $region6: #{tpu_custom_call.1} parent=1 // pred_check
      _
    $region7: #{tpu_custom_call.1} parent=1 // pred_check_branch
      %28 = sbr.rel (0) target = $region9
    $region8: #{tpu_custom_call.1} parent=1 // pred_region
      _
    $region9: #{tpu_custom_call.1} parent=1 // pred_fallthru
      _
    // Predicated region
    $region10: #{tpu_custom_call.1} parent=1 // pred_check
      _
    $region11: #{tpu_custom_call.1} parent=1 // pred_check_branch
      %30 = sbr.rel (0) target = $region13
    $region12: #{tpu_custom_call.1} parent=1 // pred_region
      _
    $region13: #{tpu_custom_call.1} parent=1 // pred_fallthru
      _
    // Predicated region
    $region14: #{tpu_custom_call.1} parent=1 // pred_check
      _
    $region15: #{tpu_custom_call.1} parent=1 // pred_check_branch
      %32 = sbr.rel (0) target = $region17
    $region16: #{tpu_custom_call.1} parent=1 // pred_region
      %s34 = ssub.s32 1024, 1024
      %35 = vsyncadd [#allocation6], %s34
      %s36 = sshll.u32 [#allocation5], 4
      %s37 = int_to_ptr.vmem [resolvable:$true] %s36
      %42 = dma.hbm_to_vmem [thread:$0]  %s3, 1024, %s37, [#allocation6], 64, 64, 4
    $region17: #{tpu_custom_call.1} parent=1 // pred_fallthru
      _
    // Predicated region
    $region18: #{tpu_custom_call.1} parent=1 // pred_check
      _
    $region19: #{tpu_custom_call.1} parent=1 // pred_check_branch
      %44 = sbr.rel (0) target = $region21
    $region20: #{tpu_custom_call.1} parent=1 // pred_region
      _
    $region21: #{tpu_custom_call.1} parent=1 // pred_fallthru
      _
    // Predicated region
    $region22: #{tpu_custom_call.1} parent=1 // pred_check
      _
    $region23: #{tpu_custom_call.1} parent=1 // pred_check_branch
      %46 = sbr.rel (0) target = $region25
    $region24: #{tpu_custom_call.1} parent=1 // pred_region
      _
    $region25: #{tpu_custom_call.1} parent=1 // pred_fallthru
      _
    // Predicated region
    $region26: #{tpu_custom_call.1} parent=1 // pred_check
      _
    $region27: #{tpu_custom_call.1} parent=1 // pred_check_branch
      %48 = sbr.rel (0) target = $region29
    $region28: #{tpu_custom_call.1} parent=1 // pred_region
      _
    $region29: #{tpu_custom_call.1} parent=1 // pred_fallthru
      _
    // Predicated region
    $region30: #{tpu_custom_call.1} parent=1 // pred_check
      _
    $region31: #{tpu_custom_call.1} parent=1 // pred_check_branch
      %50 = sbr.rel (0) target = $region33
    $region32: #{tpu_custom_call.1} parent=1 // pred_region
      %s52 = ssub.s32 1024, 1024
      %53 = vsyncadd [#allocation6], %s52
      %s54 = sshll.u32 [#allocation7], 4
      %s55 = int_to_ptr.vmem [resolvable:$true] %s54
      %60 = dma.hbm_to_vmem [thread:$0]  %s7, 1024, %s55, [#allocation6], 64, 64, 4
    $region33: #{tpu_custom_call.1} parent=1 // pred_fallthru
      _
    // Predicated region
    $region34: #{tpu_custom_call.1} parent=1 // pred_check
      _
    $region35: #{tpu_custom_call.1} parent=1 // pred_check_branch
      %62 = sbr.rel (0) target = $region37
    $region36: #{tpu_custom_call.1} parent=1 // pred_region
      _
    $region37: #{tpu_custom_call.1} parent=1 // pred_fallthru
      _
    // Predicated region
    $region38: #{tpu_custom_call.1} parent=1 // pred_check
      _
    $region39: #{tpu_custom_call.1} parent=1 // pred_check_branch
      %64 = sbr.rel (0) target = $region41
    $region40: #{tpu_custom_call.1} parent=1 // pred_region
      %65 = dma.done [#allocation3], 128
    $region41: #{tpu_custom_call.1} parent=1 // pred_fallthru
      _
    // Predicated region
    $region42: #{tpu_custom_call.1} parent=1 // pred_check
      _
    $region43: #{tpu_custom_call.1} parent=1 // pred_check_branch
      %67 = sbr.rel (0) target = $region45
    $region44: #{tpu_custom_call.1} parent=1 // pred_region
      %68 = dma.done [#allocation6], 1024
    $region45: #{tpu_custom_call.1} parent=1 // pred_fallthru
      _
    // Predicated region
    $region46: #{tpu_custom_call.1} parent=1 // pred_check
      _
    $region47: #{tpu_custom_call.1} parent=1 // pred_check_branch
      %70 = sbr.rel (0) target = $region49
    $region48: #{tpu_custom_call.1} parent=1 // pred_region
      %71 = dma.done [#allocation6], 1024
    $region49: #{tpu_custom_call.1} parent=1 // pred_fallthru
      _
    %v73 = vld [vmem:[#allocation2] sm:$0xff]
    %v74 = vld [vmem:[%s1] sm:$0x1]
    %v75 = vld [vmem:[%s2] sm:$0x1]
    %v76 = vrot.slane %v73, 4
    %v77 = vadd.f32 %v73, %v76
    %v78 = vrot.slane %v77, 2
    %v79 = vadd.f32 %v77, %v78
    %v80 = vrot.slane %v79, 1
    %v81 = vadd.f32 %v79, %v80
    %v82 = vmul.f32 %v73, %v73
    %v83 = vrot.slane %v82, 4
    %v84 = vadd.f32 %v82, %v83
    %v85 = vrot.slane %v84, 2
    %v86 = vadd.f32 %v84, %v85
    %v87 = vrot.slane %v86, 1
    %v88 = vadd.f32 %v86, %v87
    %v89 = vmul.f32 %v81, 0.16666667
    %v90 = vmul.f32 %v88, 0.16666667
    %v91 = vmul.f32 %v89, %v89
    %v92 = vsub.f32 %v90, %v91
    %v93 = vmax.f32 %v92, 0.0
    %v94 = vsub.f32 %v73, %v89
    %v96 = vlaneseq
    %v97 = vshrl.u32 %v96, 7
    %v98 = vsub.s32 0, %v97
    %v99 = vrot.slane %v74, %v98
    %v101 = vmul.f32 %v99, %v94
    %v102 = vadd.f32 %v93, 1e-05
    %v103 = vrsqrt.pop %v102
    %v104 = vmul.f32 %v101, %v103
    %v106 = vlaneseq
    %v107 = vshrl.u32 %v106, 7
    %v108 = vsub.s32 0, %v107
    %v109 = vrot.slane %v75, %v108
    %v111 = vadd.f32 %v104, %v109
    %v112 = vmul.f32 %v111, 0.5
    %v113 = vmul.f32 %v111, 0.70710677
    %v114 = verf.f32.pop %v113
    %v115 = vadd.f32 %v114, 1.0
    %v116 = vmul.f32 %v112, %v115
    %v117 = vpack.c.bf16 %v116, %v116
    %v118 = vld [vmem:[#allocation5] sm:$0xf]
    %v119 = vld [vmem:[#allocation5 + $0x4] sm:$0xf]
    %v120 = vld [vmem:[#allocation5 + $0x8] sm:$0xf]
    %v121 = vld [vmem:[#allocation5 + $0xc] sm:$0xf]
    %v122 = vld [vmem:[#allocation5 + $0x10] sm:$0xf]
    %v123 = vld [vmem:[#allocation5 + $0x14] sm:$0xf]
    %v124 = vld [vmem:[#allocation5 + $0x18] sm:$0xf]
    %v125 = vld [vmem:[#allocation5 + $0x1c] sm:$0xf]
    %v126 = vld [vmem:[#allocation5 + $0x20] sm:$0xf]
    %v127 = vld [vmem:[#allocation5 + $0x24] sm:$0xf]
    %v128 = vld [vmem:[#allocation5 + $0x28] sm:$0xf]
    %v129 = vld [vmem:[#allocation5 + $0x2c] sm:$0xf]
    %v130 = vld [vmem:[#allocation5 + $0x30] sm:$0xf]
    %v131 = vld [vmem:[#allocation5 + $0x34] sm:$0xf]
    %v132 = vld [vmem:[#allocation5 + $0x38] sm:$0xf]
    %v133 = vld [vmem:[#allocation5 + $0x3c] sm:$0xf]
    %v134 = vld [vmem:[%s4] sm:$0x1]
    %v136 = vlaneseq
    %v137 = vshrl.u32 %v136, 7
    %v138 = vsub.s32 0, %v137
    %v139 = vrot.slane %v134, %v138
    %v157 = vunpack.c.l.b16 %v118
    %v158 = vunpack.c.l.b16 %v119
    %v159 = vunpack.c.l.b16 %v120
    %v160 = vunpack.c.l.b16 %v121
    %v161 = vunpack.c.l.b16 %v122
    %v162 = vunpack.c.l.b16 %v123
    %v163 = vunpack.c.l.b16 %v124
    %v164 = vunpack.c.l.b16 %v125
    %v165 = vunpack.c.l.b16 %v126
    %v166 = vunpack.c.l.b16 %v127
    %v167 = vunpack.c.l.b16 %v128
    %v168 = vunpack.c.l.b16 %v129
    %v169 = vunpack.c.l.b16 %v130
    %v170 = vunpack.c.l.b16 %v131
    %v171 = vunpack.c.l.b16 %v132
    %v172 = vunpack.c.l.b16 %v133
    %v173 = vpack.c.b16 %v158, %v157
    %v174 = vpack.c.b16 %v160, %v159
    %v175 = vpack.c.b16 %v162, %v161
    %v176 = vpack.c.b16 %v164, %v163
    %v177 = vpack.c.b16 %v166, %v165
    %v178 = vpack.c.b16 %v168, %v167
    %v179 = vpack.c.b16 %v170, %v169
    %v180 = vpack.c.b16 %v172, %v171
    %189 = vmatprep.subr.bf16.mxu0 0
    %190 = vmatpush1.bf16.msra.mxu0 %v173
    %191 = vmatprep.subr.bf16.mxu0 0
    %192 = vmatpush1.bf16.msra.mxu0 %v174
    %193 = vmatprep.subr.bf16.mxu0 0
    %194 = vmatpush1.bf16.msra.mxu0 %v175
    %195 = vmatprep.subr.bf16.mxu0 0
    %196 = vmatpush1.bf16.msra.mxu0 %v176
    %197 = vmatprep.subr.bf16.mxu0 0
    %198 = vmatpush1.bf16.msra.mxu0 %v177
    %199 = vmatprep.subr.bf16.mxu0 0
    %200 = vmatpush1.bf16.msra.mxu0 %v178
    %201 = vmatprep.subr.bf16.mxu0 0
    %202 = vmatpush1.bf16.msra.mxu0 %v179
    %203 = vmatprep.subr.bf16.mxu0 0
    %204 = vmatpush1.bf16.msra.mxu0 %v180
    %205 = vmatprep.subr.bf16.mxu0 0
    %206 = vmatpush1.bf16.msra.mxu0 0
    %207 = vmatprep.subr.bf16.mxu0 0
    %208 = vmatpush1.bf16.msra.mxu0 0
    %209 = vmatprep.subr.bf16.mxu0 0
    %210 = vmatpush1.bf16.msra.mxu0 0
    %211 = vmatprep.subr.bf16.mxu0 0
    %212 = vmatpush1.bf16.msra.mxu0 0
    %213 = vmatprep.subr.bf16.mxu0 0
    %214 = vmatpush1.bf16.msra.mxu0 0
    %215 = vmatprep.subr.bf16.mxu0 0
    %216 = vmatpush1.bf16.msra.mxu0 0
    %217 = vmatprep.subr.bf16.mxu0 0
    %218 = vmatpush1.bf16.msra.mxu0 0
    %219 = vmatprep.subr.bf16.mxu0 0
    %220 = vmatpush1.bf16.msra.mxu0 0
    %221 = vmatprep.mubr.bf16.mxu0 0
    %222 = vmatmul.mubr.bf16.gmra.mrb[0].mxu0 %v117
    %v223 = vpop.f32.mrb[0].mxu0
    %v224 = vadd.f32 %v139, %v223
    %v225 = vpop.f32.mrb[0].mxu0
    %v226 = vpop.f32.mrb[0].mxu0
    %v227 = vpop.f32.mrb[0].mxu0
    %228 = vdwg.mxu0
    %v229 = vlaneseq
    %v230 = vshrl.u32 %v229, 7
    %vm231 = vcmp.lt.s32.totalorder %v230, 6
    %v232 = vsel %vm231, 1, 0
    %vm233 = vcmp.eq.s32.totalorder %v232, 1
    %v234 = vsel %vm233, %v224, 0.0
    %v235 = vld [vmem:[%s5] sm:$0x1]
    %v236 = vld [vmem:[%s6] sm:$0x1]
    %v237 = vrot.slane %v234, 4
    %v238 = vadd.f32 %v234, %v237
    %v239 = vrot.slane %v238, 2
    %v240 = vadd.f32 %v238, %v239
    %v241 = vrot.slane %v240, 1
    %v242 = vadd.f32 %v240, %v241
    %v243 = vmul.f32 %v234, %v234
    %v244 = vrot.slane %v243, 4
    %v245 = vadd.f32 %v243, %v244
    %v246 = vrot.slane %v245, 2
    %v247 = vadd.f32 %v245, %v246
    %v248 = vrot.slane %v247, 1
    %v249 = vadd.f32 %v247, %v248
    %v250 = vmul.f32 %v242, 0.16666667
    %v251 = vmul.f32 %v249, 0.16666667
    %v252 = vmul.f32 %v250, %v250
    %v253 = vsub.f32 %v251, %v252
    %v254 = vmax.f32 %v253, 0.0
    %v255 = vsub.f32 %v234, %v250
    %v257 = vlaneseq
    %v258 = vshrl.u32 %v257, 7
    %v259 = vsub.s32 0, %v258
    %v260 = vrot.slane %v235, %v259
    %v262 = vmul.f32 %v260, %v255
    %v263 = vadd.f32 %v254, 1e-05
    %v264 = vrsqrt.pop %v263
    %v265 = vmul.f32 %v262, %v264
    %v267 = vlaneseq
    %v268 = vshrl.u32 %v267, 7
    %v269 = vsub.s32 0, %v268
    %v270 = vrot.slane %v236, %v269
    %v272 = vadd.f32 %v265, %v270
    %v273 = vmul.f32 %v272, 0.5
    %v274 = vmul.f32 %v272, 0.70710677
    %v275 = verf.f32.pop %v274
    %v276 = vadd.f32 %v275, 1.0
    %v277 = vmul.f32 %v273, %v276
    %v278 = vpack.c.bf16 %v277, %v277
    %v279 = vld [vmem:[#allocation7] sm:$0xf]
    %v280 = vld [vmem:[#allocation7 + $0x4] sm:$0xf]
    %v281 = vld [vmem:[#allocation7 + $0x8] sm:$0xf]
    %v282 = vld [vmem:[#allocation7 + $0xc] sm:$0xf]
    %v283 = vld [vmem:[#allocation7 + $0x10] sm:$0xf]
    %v284 = vld [vmem:[#allocation7 + $0x14] sm:$0xf]
    %v285 = vld [vmem:[#allocation7 + $0x18] sm:$0xf]
    %v286 = vld [vmem:[#allocation7 + $0x1c] sm:$0xf]
    %v287 = vld [vmem:[#allocation7 + $0x20] sm:$0xf]
    %v288 = vld [vmem:[#allocation7 + $0x24] sm:$0xf]
    %v289 = vld [vmem:[#allocation7 + $0x28] sm:$0xf]
    %v290 = vld [vmem:[#allocation7 + $0x2c] sm:$0xf]
    %v291 = vld [vmem:[#allocation7 + $0x30] sm:$0xf]
    %v292 = vld [vmem:[#allocation7 + $0x34] sm:$0xf]
    %v293 = vld [vmem:[#allocation7 + $0x38] sm:$0xf]
    %v294 = vld [vmem:[#allocation7 + $0x3c] sm:$0xf]
    %v295 = vld [vmem:[%s8] sm:$0x1]
    %v297 = vlaneseq
    %v298 = vshrl.u32 %v297, 7
    %v299 = vsub.s32 0, %v298
    %v300 = vrot.slane %v295, %v299
    %v318 = vunpack.c.l.b16 %v279
    %v319 = vunpack.c.l.b16 %v280
    %v320 = vunpack.c.l.b16 %v281
    %v321 = vunpack.c.l.b16 %v282
    %v322 = vunpack.c.l.b16 %v283
    %v323 = vunpack.c.l.b16 %v284
    %v324 = vunpack.c.l.b16 %v285
    %v325 = vunpack.c.l.b16 %v286
    %v326 = vunpack.c.l.b16 %v287
    %v327 = vunpack.c.l.b16 %v288
    %v328 = vunpack.c.l.b16 %v289
    %v329 = vunpack.c.l.b16 %v290
    %v330 = vunpack.c.l.b16 %v291
    %v331 = vunpack.c.l.b16 %v292
    %v332 = vunpack.c.l.b16 %v293
    %v333 = vunpack.c.l.b16 %v294
    %v334 = vpack.c.b16 %v319, %v318
    %v335 = vpack.c.b16 %v321, %v320
    %v336 = vpack.c.b16 %v323, %v322
    %v337 = vpack.c.b16 %v325, %v324
    %v338 = vpack.c.b16 %v327, %v326
    %v339 = vpack.c.b16 %v329, %v328
    %v340 = vpack.c.b16 %v331, %v330
    %v341 = vpack.c.b16 %v333, %v332
    %350 = vmatprep.subr.bf16.mxu0 0
    %351 = vmatpush1.bf16.msra.mxu0 %v334
    %352 = vmatprep.subr.bf16.mxu0 0
    %353 = vmatpush1.bf16.msra.mxu0 %v335
    %354 = vmatprep.subr.bf16.mxu0 0
    %355 = vmatpush1.bf16.msra.mxu0 %v336
    %356 = vmatprep.subr.bf16.mxu0 0
    %357 = vmatpush1.bf16.msra.mxu0 %v337
    %358 = vmatprep.subr.bf16.mxu0 0
    %359 = vmatpush1.bf16.msra.mxu0 %v338
    %360 = vmatprep.subr.bf16.mxu0 0
    %361 = vmatpush1.bf16.msra.mxu0 %v339
    %362 = vmatprep.subr.bf16.mxu0 0
    %363 = vmatpush1.bf16.msra.mxu0 %v340
    %364 = vmatprep.subr.bf16.mxu0 0
    %365 = vmatpush1.bf16.msra.mxu0 %v341
    %366 = vmatprep.subr.bf16.mxu0 0
    %367 = vmatpush1.bf16.msra.mxu0 0
    %368 = vmatprep.subr.bf16.mxu0 0
    %369 = vmatpush1.bf16.msra.mxu0 0
    %370 = vmatprep.subr.bf16.mxu0 0
    %371 = vmatpush1.bf16.msra.mxu0 0
    %372 = vmatprep.subr.bf16.mxu0 0
    %373 = vmatpush1.bf16.msra.mxu0 0
    %374 = vmatprep.subr.bf16.mxu0 0
    %375 = vmatpush1.bf16.msra.mxu0 0
    %376 = vmatprep.subr.bf16.mxu0 0
    %377 = vmatpush1.bf16.msra.mxu0 0
    %378 = vmatprep.subr.bf16.mxu0 0
    %379 = vmatpush1.bf16.msra.mxu0 0
    %380 = vmatprep.subr.bf16.mxu0 0
    %381 = vmatpush1.bf16.msra.mxu0 0
    %382 = vmatprep.mubr.bf16.mxu0 0
    %383 = vmatmul.mubr.bf16.gmra.mrb[0].mxu0 %v278
    %v384 = vpop.f32.mrb[0].mxu0
    %v385 = vadd.f32 %v300, %v384
    %v386 = vpop.f32.mrb[0].mxu0
    %v387 = vpop.f32.mrb[0].mxu0
    %v388 = vpop.f32.mrb[0].mxu0
    %389 = vdwg.mxu0
    %v390 = vadd.f32 %v385, %v73
    %391 = vst [vmem:[#allocation8] sm:$0xff] %v390
    // Predicated region
    $region50: #{tpu_custom_call.1} parent=1 // pred_check
      _
    $region51: #{tpu_custom_call.1} parent=1 // pred_check_branch
      %393 = sbr.rel (0) target = $region53
    $region52: #{tpu_custom_call.1} parent=1 // pred_region
      %s395 = ssub.s32 128, 128
      %396 = vsyncadd [#allocation4], %s395
      %s398 = sshll.u32 [#allocation8], 4
      %s399 = int_to_ptr.vmem [resolvable:$true] %s398
      %401 = dma.vmem_to_hbm [thread:$0]  %s399, 128, %s9, [#allocation4]
    $region53: #{tpu_custom_call.1} parent=1 // pred_fallthru
      _
    // Predicated region
    $region54: #{tpu_custom_call.1} parent=1 // pred_check
      _
    $region55: #{tpu_custom_call.1} parent=1 // pred_check_branch
      %403 = sbr.rel (0) target = $region57
    $region56: #{tpu_custom_call.1} parent=1 // pred_region
      %404 = dma.done [#allocation4], 128
    $region57: #{tpu_custom_call.1} parent=1 // pred_fallthru
      _
    %405 = vsyncpa [#allocation3], 1
    %406 = vsyncpa [#allocation6], 1
    %407 = vsyncpa [#allocation4], 1

</llo_original>
